<compile_context>
chip_gen: v5e
topology: v5e:2x2
jax: 0.10.0
libtpu: 0.0.40
codegen_flags: <defaults>
</compile_context>

<pallas_src>
import jax
import jax.numpy as jnp
from jax.experimental import pallas as pl
from jax.experimental.pallas import tpu as pltpu


def _leaky(v):
    # nn.LeakyReLU() default negative_slope = 0.01
    return jnp.where(v >= 0.0, v, jnp.float32(0.01) * v)


def _gatnet_kernel(x_ref, g_ref, w1_ref, b1_ref, w2_ref, b2_ref, o_ref):
    # x_ref : (TB, N, C)   NOTE: C=4 uses 4/128 lanes; fine at these sizes, and
    #                      self-resolves if T*F grows in real deployments.
    # g_ref : (N, N)        w1_ref: (H, C, hid)    b1_ref: (H, hid)
    # w2_ref: (H, hid, out) b2_ref: (1, out)       o_ref : (TB, N, out)
    TB, N, C = x_ref.shape
    H, _, hid = w1_ref.shape
    out_c = o_ref.shape[-1]

    x = x_ref[...]
    g = g_ref[...]
    w1 = w1_ref[...]
    b1 = b1_ref[...]
    w2 = w2_ref[...]
    b2 = b2_ref[...]

    def attention(h):
        # h: [Bb, N, D], bias-free (torch: scores use h = W(x) only, no bias).
        s = jax.lax.dot_general(
            h, h, (((2,), (2,)), ((0,), (0,))),
            preferred_element_type=jnp.float32)                  # [Bb, N, N]
        s = s * g[None, :, :]                                    # graph mask
        # torch parity: outputs.masked_fill_(outputs == 0, -1e16)
        s = jnp.where(s == 0.0, jnp.float32(-1e16), s)
        s = s - jnp.max(s, axis=-1, keepdims=True)               # stable softmax
        e = jnp.exp(s)
        denom = jnp.sum(e, axis=-1, keepdims=True)
        attn = e * pl.reciprocal(denom, approx=True)             # EUP, not VPU divide
        return jax.lax.dot_general(
            attn, h, (((2,), (1,)), ((0,), (0,))),
            preferred_element_type=jnp.float32)                  # [Bb, N, D]

    # ---- layer 1: all heads folded into the batch axis of one batched matmul
    xb = jnp.broadcast_to(x[:, None], (TB, H, N, C)).reshape(TB * H, N, C)
    w1b = jnp.broadcast_to(w1[None], (TB, H, C, hid)).reshape(TB * H, C, hid)
    h = jax.lax.dot_general(
        xb, w1b, (((2,), (1,)), ((0,), (0,))),
        preferred_element_type=jnp.float32)                      # [TB*H, N, hid]

    # single attention trace for every (batch, head) pair
    hv = attention(h)                                            # [TB*H, N, hid]
    hv = hv.reshape(TB, H, N, hid) + b1[None, :, None, :]        # bias AFTER attn (torch)
    hv = _leaky(hv)                                              # GATSubNet.act

    # ---- concat(heads) @ W_out == sum_h head_h @ W2_h (concat never built)
    h2 = jnp.dot(hv[:, 0].reshape(TB * N, hid), w2[0],
                 preferred_element_type=jnp.float32)
    for hd in range(1, H):
        h2 = h2 + jnp.dot(hv[:, hd].reshape(TB * N, hid), w2[hd],
                          preferred_element_type=jnp.float32)
    h2 = h2.reshape(TB, N, out_c)

    # ---- output attention layer + final LeakyReLU; narrow (out_c-lane) store
    out = attention(h2) + b2
    o_ref[...] = _leaky(out)


def init_gatnet_params(key, in_c, hid_c, out_c, n_heads):
    """N(0,1) init matching nn.init.normal_ on every W.weight and b."""
    key, k1, k2, k3, k4 = jax.random.split(key, 5)
    return {
        "w1": jax.random.normal(k1, (n_heads, in_c, hid_c), jnp.float32),
        "b1": jax.random.normal(k2, (n_heads, hid_c), jnp.float32),
        "out_w": jax.random.normal(k3, (n_heads * hid_c, out_c), jnp.float32),
        "out_b": jax.random.normal(k4, (out_c,), jnp.float32),
    }


def _round_up(v, m):
    return ((v + m - 1) // m) * m


def gatnet_forward(params, flow_x, graph):
    """GATNet.forward: flow_x [B, N, ...] -> [B, N, 1, out_c]."""
    B, N = flow_x.shape[0], flow_x.shape[1]
    flow = flow_x.reshape(B, N, -1).astype(jnp.float32)          # [B, N, C]
    C = flow.shape[-1]

    w1 = params["w1"].astype(jnp.float32)                        # [H, C, hid]
    b1 = params["b1"].astype(jnp.float32)                        # [H, hid]
    H, _, hid_c = w1.shape
    out_c = params["out_w"].shape[-1]
    w2 = params["out_w"].astype(jnp.float32).reshape(H, hid_c, out_c)
    b2 = params["out_b"].astype(jnp.float32).reshape(1, out_c)
    graph = graph.astype(jnp.float32)

    # ---- device-aware VMEM budget (v5e/v6e: 128 MiB, v7x: 64 MiB per TC) ----
    try:
        vmem_cap = int(pltpu.get_tpu_info().vmem_capacity_bytes)
        if vmem_cap <= 0:
            raise ValueError("bad vmem capacity")
    except Exception:
        vmem_cap = 64 * 2 ** 20          # conservative fallback (v7x per-TC)
    vmem_limit = int(min(48 * 2 ** 20, int(0.45 * vmem_cap)))    # ~48 MiB v5e/v6e, ~28 MiB v7x
    tile_budget = vmem_limit // 2        # headroom: double-buffers + temporaries

    # conservative (8,128)-padded per-batch-element VMEM footprint
    p128 = lambda v: _round_up(v, 128)
    p8 = lambda v: _round_up(v, 8)
    per_elem = 4 * (
        2 * N * p128(C)                  # x block (double-buffered)
        + H * N * p128(C)                # x broadcast over heads
        + H * p8(C) * p128(hid_c)        # w1 broadcast
        + 4 * H * N * p128(hid_c)        # h / attention out / activations
        + 5 * H * N * p128(N)            # scores / exp / attention weights
        + 4 * N * p128(N)                # output-layer scores
        + 4 * N * p128(out_c)            # h2 / result / output block
    )
    fixed = 4 * 2 * (N * p128(N) + H * p8(C) * p128(hid_c) + p8(H) * p128(hid_c)
                     + H * p8(hid_c) * p128(out_c) + p8(1) * p128(out_c))
    cap = max(1, (tile_budget - fixed) // max(per_elem, 1))

    # Batch tile: largest divisor of B within the VMEM cap, but guarantee >= 2
    # grid steps whenever B >= 2 so both v7x TensorCores get work.
    tb_max = max(1, min(cap, B // 2)) if B >= 2 else 1
    TB = 1
    for t in range(1, B + 1):
        if B % t == 0 and t <= tb_max:
            TB = t
    grid = (B // TB,)

    # Advisory cost estimate so XLA schedules surrounding ops around the call.
    flops = int(2 * B * H * N * C * hid_c          # layer-1 projection
                + 4 * B * H * N * N * hid_c        # layer-1 attention (2 bmms)
                + 2 * B * N * H * hid_c * out_c    # output projection
                + 4 * B * N * N * out_c)           # output attention (2 bmms)
    transcendentals = int(B * (H + 1) * N * N + B * (H + 1) * N)
    bytes_accessed = int(4 * (B * N * C + N * N + w1.size + b1.size
                              + w2.size + b2.size + B * N * out_c))
    cost = pl.CostEstimate(flops=flops, transcendentals=transcendentals,
                           bytes_accessed=bytes_accessed)

    out = pl.pallas_call(
        _gatnet_kernel,
        out_shape=jax.ShapeDtypeStruct((B, N, out_c), jnp.float32),
        grid=grid,
        in_specs=[
            pl.BlockSpec((TB, N, C), lambda i: (i, 0, 0)),          # x (batch tile)
            pl.BlockSpec((N, N), lambda i: (0, 0)),                 # graph (grid-invariant)
            pl.BlockSpec((H, C, hid_c), lambda i: (0, 0, 0)),       # per-head W1
            pl.BlockSpec((H, hid_c), lambda i: (0, 0)),             # per-head b1
            pl.BlockSpec((H, hid_c, out_c), lambda i: (0, 0, 0)),   # W_out (head-split)
            pl.BlockSpec((1, out_c), lambda i: (0, 0)),             # b_out
        ],
        out_specs=pl.BlockSpec((TB, N, out_c), lambda i: (i, 0, 0)),
        compiler_params=pltpu.CompilerParams(
            dimension_semantics=("parallel",),
            vmem_limit_bytes=vmem_limit,
        ),
        cost_estimate=cost,
    )(flow, graph, w1, b1, w2, b2)

    # prediction = subnet(...).unsqueeze(2)
    return out[:, :, None, :]                                      # [B, N, 1, out_c]


if __name__ == "__main__":
    # data['flow_x'] : [B, N, T, F] = [2, 16, 1, 4] -> view(B, N, -1) = [2, 16, 4]
    # data['graph']  : [1, N, N]    -> graph = data['graph'][0] = [16, 16]
    B, N, T, F_in = 2, 16, 1, 4
    in_c, hid_c, out_c, n_heads = T * F_in, 8, 2, 2

    key = jax.random.PRNGKey(0)
    k_params, k_flow, k_graph = jax.random.split(key, 3)

    params = init_gatnet_params(k_params, in_c, hid_c, out_c, n_heads)
    flow_x = jax.random.normal(k_flow, (B, N, T, F_in), dtype=jnp.float32)

    # Symmetric 0/1 adjacency with self-loops.
    adj = (jax.random.uniform(k_graph, (N, N)) > 0.5).astype(jnp.float32)
    adj = jnp.maximum(adj, adj.T)
    adj = jnp.maximum(adj, jnp.eye(N, dtype=jnp.float32))
    graph_batched = adj[None]                                      # [1, N, N]
    graph = graph_batched[0]                                       # [N, N]

    prediction = gatnet_forward(params, flow_x, graph)
    jax.block_until_ready(prediction)
    assert prediction.shape == (B, N, 1, out_c)
    assert prediction.dtype == jnp.float32
    print("KERNEL_OK")
</pallas_src>

<mosaic_0001>
module attributes {stable_mosaic.version = 11 : i64} {
  func.func @_gatnet_kernel(%arg0: i32, %arg1: memref<1x16x4xf32, #tpu.memory_space<vmem>>, %arg2: memref<16x16xf32, #tpu.memory_space<vmem>>, %arg3: memref<2x4x8xf32, #tpu.memory_space<vmem>>, %arg4: memref<2x8xf32, #tpu.memory_space<vmem>>, %arg5: memref<2x8x2xf32, #tpu.memory_space<vmem>>, %arg6: memref<1x2xf32, #tpu.memory_space<vmem>>, %arg7: memref<1x16x2xf32, #tpu.memory_space<vmem>>) attributes {dimension_semantics = [#tpu.dimension_semantics<parallel>], iteration_bounds = array<i64: 2>, scalar_prefetch = 0 : i64, scratch_operands = 0 : i64, tpu.core_type = #tpu.core_type<tc>, window_params = [{transform_indices = @transform_0, window_bounds = array<i64: 1, 16, 4>}, {pipeline_mode = #tpu.pipeline_mode<synchronous>, transform_indices = @transform_1, window_bounds = array<i64: 16, 16>}, {pipeline_mode = #tpu.pipeline_mode<synchronous>, transform_indices = @transform_2, window_bounds = array<i64: 2, 4, 8>}, {pipeline_mode = #tpu.pipeline_mode<synchronous>, transform_indices = @transform_3, window_bounds = array<i64: 2, 8>}, {pipeline_mode = #tpu.pipeline_mode<synchronous>, transform_indices = @transform_4, window_bounds = array<i64: 2, 8, 2>}, {pipeline_mode = #tpu.pipeline_mode<synchronous>, transform_indices = @transform_5, window_bounds = array<i64: 1, 2>}, {transform_indices = @transform_6, window_bounds = array<i64: 1, 16, 2>}]} {
    %c0 = arith.constant 0 : index
    %c0_0 = arith.constant 0 : index
    %c0_1 = arith.constant 0 : index
    %0 = vector.load %arg1[%c0, %c0_0, %c0_1] : memref<1x16x4xf32, #tpu.memory_space<vmem>>, vector<1x16x4xf32>
    %c0_2 = arith.constant 0 : index
    %c0_3 = arith.constant 0 : index
    %1 = vector.load %arg2[%c0_2, %c0_3] : memref<16x16xf32, #tpu.memory_space<vmem>>, vector<16x16xf32>
    %c0_4 = arith.constant 0 : index
    %c0_5 = arith.constant 0 : index
    %c0_6 = arith.constant 0 : index
    %2 = vector.load %arg3[%c0_4, %c0_5, %c0_6] : memref<2x4x8xf32, #tpu.memory_space<vmem>>, vector<2x4x8xf32>
    %c0_7 = arith.constant 0 : index
    %c0_8 = arith.constant 0 : index
    %3 = vector.load %arg4[%c0_7, %c0_8] : memref<2x8xf32, #tpu.memory_space<vmem>>, vector<2x8xf32>
    %c0_9 = arith.constant 0 : index
    %c0_10 = arith.constant 0 : index
    %c0_11 = arith.constant 0 : index
    %4 = vector.load %arg5[%c0_9, %c0_10, %c0_11] : memref<2x8x2xf32, #tpu.memory_space<vmem>>, vector<2x8x2xf32>
    %c0_12 = arith.constant 0 : index
    %c0_13 = arith.constant 0 : index
    %5 = vector.load %arg6[%c0_12, %c0_13] : memref<1x2xf32, #tpu.memory_space<vmem>>, vector<1x2xf32>
    %6 = vector.shape_cast %0 : vector<1x16x4xf32> to vector<1x1x16x4xf32>
    %7 = vector.shape_cast %6 : vector<1x1x16x4xf32> to vector<1x1x16x4xf32>
    %8 = vector.broadcast %7 : vector<1x1x16x4xf32> to vector<1x2x16x4xf32>
    %9 = vector.shape_cast %8 : vector<1x2x16x4xf32> to vector<2x16x4xf32>
    %10 = vector.shape_cast %2 : vector<2x4x8xf32> to vector<1x2x4x8xf32>
    %11 = vector.shape_cast %10 : vector<1x2x4x8xf32> to vector<2x4x8xf32>
    %cst = arith.constant dense<0.000000e+00> : vector<2x16x8xf32>
    %12 = tpu.matmul %9, %11, %cst {dimension_numbers = #tpu.dot_dimension_numbers<[2], [1], [1], [2], [0, 0, 0, 1, 1, 2], [0], [0]>} : vector<2x16x4xf32>, vector<2x4x8xf32>, vector<2x16x8xf32> -> vector<2x16x8xf32>
    %cst_14 = arith.constant dense<0.000000e+00> : vector<2x16x16xf32>
    %13 = tpu.matmul %12, %12, %cst_14 {dimension_numbers = #tpu.dot_dimension_numbers<[2], [2], [1], [1], [0, 0, 0, 1, 1, 1], [0], [0]>} : vector<2x16x8xf32>, vector<2x16x8xf32>, vector<2x16x16xf32> -> vector<2x16x16xf32>
    %14 = vector.shape_cast %1 : vector<16x16xf32> to vector<1x16x16xf32>
    %15 = vector.broadcast %14 : vector<1x16x16xf32> to vector<2x16x16xf32>
    %16 = arith.mulf %13, %15 : vector<2x16x16xf32>
    %cst_15 = arith.constant 0.000000e+00 : f32
    %17 = vector.broadcast %cst_15 : f32 to vector<2x16x16xf32>
    %18 = arith.cmpf oeq, %16, %17 : vector<2x16x16xf32>
    %cst_16 = arith.constant -1.000000e+16 : f32
    %19 = vector.broadcast %cst_16 : f32 to vector<2x16x16xf32>
    %20 = arith.select %18, %19, %16 : vector<2x16x16xi1>, vector<2x16x16xf32>
    %cst_17 = arith.constant dense<0xFF800000> : vector<2x16xf32>
    %21 = vector.multi_reduction <maximumf>, %20, %cst_17 [2] : vector<2x16x16xf32> to vector<2x16xf32>
    %22 = vector.shape_cast %21 : vector<2x16xf32> to vector<2x16x1xf32>
    %23 = vector.broadcast %22 : vector<2x16x1xf32> to vector<2x16x16xf32>
    %24 = arith.subf %20, %23 : vector<2x16x16xf32>
    %25 = math.exp %24 : vector<2x16x16xf32>
    %cst_18 = arith.constant dense<0.000000e+00> : vector<2x16xf32>
    %26 = vector.multi_reduction <add>, %25, %cst_18 [2] : vector<2x16x16xf32> to vector<2x16xf32>
    %27 = vector.shape_cast %26 : vector<2x16xf32> to vector<2x16x1xf32>
    %28 = tpu.reciprocal %27 {approx = true} : vector<2x16x1xf32> -> vector<2x16x1xf32>
    %29 = vector.broadcast %28 : vector<2x16x1xf32> to vector<2x16x16xf32>
    %30 = arith.mulf %25, %29 : vector<2x16x16xf32>
    %cst_19 = arith.constant dense<0.000000e+00> : vector<2x16x8xf32>
    %31 = tpu.matmul %30, %12, %cst_19 {dimension_numbers = #tpu.dot_dimension_numbers<[2], [1], [1], [2], [0, 0, 0, 1, 1, 2], [0], [0]>} : vector<2x16x16xf32>, vector<2x16x8xf32>, vector<2x16x8xf32> -> vector<2x16x8xf32>
    %32 = vector.shape_cast %31 : vector<2x16x8xf32> to vector<1x2x16x8xf32>
    %33 = vector.shape_cast %3 : vector<2x8xf32> to vector<1x2x1x8xf32>
    %34 = vector.broadcast %33 : vector<1x2x1x8xf32> to vector<1x2x16x8xf32>
    %35 = arith.addf %32, %34 : vector<1x2x16x8xf32>
    %cst_20 = arith.constant 0.000000e+00 : f32
    %36 = vector.broadcast %cst_20 : f32 to vector<1x2x16x8xf32>
    %37 = arith.cmpf oge, %35, %36 : vector<1x2x16x8xf32>
    %cst_21 = arith.constant 0.00999999977 : f32
    %38 = vector.broadcast %cst_21 : f32 to vector<1x2x16x8xf32>
    %39 = arith.mulf %38, %35 : vector<1x2x16x8xf32>
    %40 = arith.select %37, %35, %39 : vector<1x2x16x8xi1>, vector<1x2x16x8xf32>
    %41 = vector.extract_strided_slice %40 {offsets = [0, 0, 0, 0], sizes = [1, 1, 16, 8], strides = [1, 1, 1, 1]} : vector<1x2x16x8xf32> to vector<1x1x16x8xf32>
    %42 = vector.shape_cast %41 : vector<1x1x16x8xf32> to vector<1x16x8xf32>
    %43 = vector.shape_cast %42 : vector<1x16x8xf32> to vector<16x8xf32>
    %44 = vector.extract_strided_slice %4 {offsets = [0, 0, 0], sizes = [1, 8, 2], strides = [1, 1, 1]} : vector<2x8x2xf32> to vector<1x8x2xf32>
    %45 = vector.shape_cast %44 : vector<1x8x2xf32> to vector<8x2xf32>
    %cst_22 = arith.constant dense<0.000000e+00> : vector<16x2xf32>
    %46 = tpu.matmul %43, %45, %cst_22 {dimension_numbers = #tpu.dot_dimension_numbers<[1], [0], [0], [1], [0, 0, 1, 1], [], []>} : vector<16x8xf32>, vector<8x2xf32>, vector<16x2xf32> -> vector<16x2xf32>
    %47 = vector.extract_strided_slice %40 {offsets = [0, 1, 0, 0], sizes = [1, 1, 16, 8], strides = [1, 1, 1, 1]} : vector<1x2x16x8xf32> to vector<1x1x16x8xf32>
    %48 = vector.shape_cast %47 : vector<1x1x16x8xf32> to vector<1x16x8xf32>
    %49 = vector.shape_cast %48 : vector<1x16x8xf32> to vector<16x8xf32>
    %50 = vector.extract_strided_slice %4 {offsets = [1, 0, 0], sizes = [1, 8, 2], strides = [1, 1, 1]} : vector<2x8x2xf32> to vector<1x8x2xf32>
    %51 = vector.shape_cast %50 : vector<1x8x2xf32> to vector<8x2xf32>
    %cst_23 = arith.constant dense<0.000000e+00> : vector<16x2xf32>
    %52 = tpu.matmul %49, %51, %cst_23 {dimension_numbers = #tpu.dot_dimension_numbers<[1], [0], [0], [1], [0, 0, 1, 1], [], []>} : vector<16x8xf32>, vector<8x2xf32>, vector<16x2xf32> -> vector<16x2xf32>
    %53 = arith.addf %46, %52 : vector<16x2xf32>
    %54 = vector.shape_cast %53 : vector<16x2xf32> to vector<1x16x2xf32>
    %cst_24 = arith.constant dense<0.000000e+00> : vector<1x16x16xf32>
    %55 = tpu.matmul %54, %54, %cst_24 {dimension_numbers = #tpu.dot_dimension_numbers<[2], [2], [1], [1], [0, 0, 0, 1, 1, 1], [0], [0]>} : vector<1x16x2xf32>, vector<1x16x2xf32>, vector<1x16x16xf32> -> vector<1x16x16xf32>
    %56 = vector.shape_cast %1 : vector<16x16xf32> to vector<1x16x16xf32>
    %57 = arith.mulf %55, %56 : vector<1x16x16xf32>
    %cst_25 = arith.constant 0.000000e+00 : f32
    %58 = vector.broadcast %cst_25 : f32 to vector<1x16x16xf32>
    %59 = arith.cmpf oeq, %57, %58 : vector<1x16x16xf32>
    %cst_26 = arith.constant -1.000000e+16 : f32
    %60 = vector.broadcast %cst_26 : f32 to vector<1x16x16xf32>
    %61 = arith.select %59, %60, %57 : vector<1x16x16xi1>, vector<1x16x16xf32>
    %cst_27 = arith.constant dense<0xFF800000> : vector<1x16xf32>
    %62 = vector.multi_reduction <maximumf>, %61, %cst_27 [2] : vector<1x16x16xf32> to vector<1x16xf32>
    %63 = vector.shape_cast %62 : vector<1x16xf32> to vector<1x16x1xf32>
    %64 = vector.broadcast %63 : vector<1x16x1xf32> to vector<1x16x16xf32>
    %65 = arith.subf %61, %64 : vector<1x16x16xf32>
    %66 = math.exp %65 : vector<1x16x16xf32>
    %cst_28 = arith.constant dense<0.000000e+00> : vector<1x16xf32>
    %67 = vector.multi_reduction <add>, %66, %cst_28 [2] : vector<1x16x16xf32> to vector<1x16xf32>
    %68 = vector.shape_cast %67 : vector<1x16xf32> to vector<1x16x1xf32>
    %69 = tpu.reciprocal %68 {approx = true} : vector<1x16x1xf32> -> vector<1x16x1xf32>
    %70 = vector.broadcast %69 : vector<1x16x1xf32> to vector<1x16x16xf32>
    %71 = arith.mulf %66, %70 : vector<1x16x16xf32>
    %cst_29 = arith.constant dense<0.000000e+00> : vector<1x16x2xf32>
    %72 = tpu.matmul %71, %54, %cst_29 {dimension_numbers = #tpu.dot_dimension_numbers<[2], [1], [1], [2], [0, 0, 0, 1, 1, 2], [0], [0]>} : vector<1x16x16xf32>, vector<1x16x2xf32>, vector<1x16x2xf32> -> vector<1x16x2xf32>
    %73 = vector.shape_cast %5 : vector<1x2xf32> to vector<1x1x2xf32>
    %74 = vector.broadcast %73 : vector<1x1x2xf32> to vector<1x16x2xf32>
    %75 = arith.addf %72, %74 : vector<1x16x2xf32>
    %cst_30 = arith.constant 0.000000e+00 : f32
    %76 = vector.broadcast %cst_30 : f32 to vector<1x16x2xf32>
    %77 = arith.cmpf oge, %75, %76 : vector<1x16x2xf32>
    %cst_31 = arith.constant 0.00999999977 : f32
    %78 = vector.broadcast %cst_31 : f32 to vector<1x16x2xf32>
    %79 = arith.mulf %78, %75 : vector<1x16x2xf32>
    %80 = arith.select %77, %75, %79 : vector<1x16x2xi1>, vector<1x16x2xf32>
    %c0_32 = arith.constant 0 : index
    %c0_33 = arith.constant 0 : index
    %c0_34 = arith.constant 0 : index
    %81 = vector.load %arg7[%c0_32, %c0_33, %c0_34] : memref<1x16x2xf32, #tpu.memory_space<vmem>>, vector<1x16x2xf32>
    tpu.vector_store %arg7[%c0_32, %c0_33, %c0_34], %80 {strides = array<i32>} : memref<1x16x2xf32, #tpu.memory_space<vmem>>, vector<1x16x2xf32>,
    return
  }
  func.func @transform_0(%arg0: i32) -> (i32, i32, i32) {
    %c0_i32 = arith.constant 0 : i32
    %c0_i32_0 = arith.constant 0 : i32
    %c0_i32_1 = arith.constant 0 : i32
    return %arg0, %c0_i32, %c0_i32_0 : i32, i32, i32
  }
  func.func @transform_1(%arg0: i32) -> (i32, i32) {
    %c0_i32 = arith.constant 0 : i32
    %c0_i32_0 = arith.constant 0 : i32
    %c0_i32_1 = arith.constant 0 : i32
    return %c0_i32, %c0_i32_0 : i32, i32
  }
  func.func @transform_2(%arg0: i32) -> (i32, i32, i32) {
    %c0_i32 = arith.constant 0 : i32
    %c0_i32_0 = arith.constant 0 : i32
    %c0_i32_1 = arith.constant 0 : i32
    %c0_i32_2 = arith.constant 0 : i32
    return %c0_i32, %c0_i32_0, %c0_i32_1 : i32, i32, i32
  }
  func.func @transform_3(%arg0: i32) -> (i32, i32) {
    %c0_i32 = arith.constant 0 : i32
    %c0_i32_0 = arith.constant 0 : i32
    %c0_i32_1 = arith.constant 0 : i32
    return %c0_i32, %c0_i32_0 : i32, i32
  }
  func.func @transform_4(%arg0: i32) -> (i32, i32, i32) {
    %c0_i32 = arith.constant 0 : i32
    %c0_i32_0 = arith.constant 0 : i32
    %c0_i32_1 = arith.constant 0 : i32
    %c0_i32_2 = arith.constant 0 : i32
    return %c0_i32, %c0_i32_0, %c0_i32_1 : i32, i32, i32
  }
  func.func @transform_5(%arg0: i32) -> (i32, i32) {
    %c0_i32 = arith.constant 0 : i32
    %c0_i32_0 = arith.constant 0 : i32
    %c0_i32_1 = arith.constant 0 : i32
    return %c0_i32, %c0_i32_0 : i32, i32
  }
  func.func @transform_6(%arg0: i32) -> (i32, i32, i32) {
    %c0_i32 = arith.constant 0 : i32
    %c0_i32_0 = arith.constant 0 : i32
    %c0_i32_1 = arith.constant 0 : i32
    return %arg0, %c0_i32, %c0_i32_0 : i32, i32, i32
  }
}

</mosaic_0001>

<llo_original>
// kernel: tpu_custom_call.1
$region0: #{tpu_custom_call.1}
  #allocation0 [shape = 'u32[]', space=smem, size = 0x4, offset = 0x4, fixed_abs, tag = 'smem constant byte address 0x4 - core index']
  #allocation1 [shape = 'u32[72,128]{1,0:T(1,128)}', space=vmem, size = 0x9000, scoped, tag = 'internal scratch']
  %s0 = inlined_call_operand.vmem [shape: f32[2,16,4], index: 0, kind: input, shape index: {}]
  %s1 = inlined_call_operand.vmem [shape: f32[16,16], index: 1, kind: input, shape index: {}]
  %s2 = inlined_call_operand.vmem [shape: f32[2,4,8], index: 2, kind: input, shape index: {}]
  %s3 = inlined_call_operand.vmem [shape: f32[2,8], index: 3, kind: input, shape index: {}]
  %s4 = inlined_call_operand.vmem [shape: f32[2,8,2], index: 4, kind: input, shape index: {}]
  %s5 = inlined_call_operand.vmem [shape: f32[1,2], index: 5, kind: input, shape index: {}]
  %s6 = inlined_call_operand.vmem [shape: f32[2,16,2], index: 6, kind: output, shape index: {}]
  %s7 = sld [smem:[#allocation0]]
  $region57: #{tpu_custom_call.1} parent=0
    _
  %s9 = ssub.s32 1, %s7
  %s10 = scalar_select 0, %s9, %s7
  loop: start=0, step=1, limit=4
  $region2: #{tpu_custom_call.1} parent=0 // loop_pre_header
    _
  $region3: #{tpu_custom_call.1} parent=0 // loop_header
    %s12 = sphi 0, %s16
    %p13 = scmp.ge.s32.totalorder %s12, 4
    %s22 = sphi 0, %s24
    %s25 = sphi 0, %s22
    %s26 = sphi 0, %s25
    %s42 = sphi 0, %s26
    %s46 = sphi 0, %s46
    %s48 = sphi 0, %s46
    %s49 = sphi 0, %s48
    %s63 = sphi 0, %s49
    %s67 = sphi 0, %s67
    %s69 = sphi 0, %s67
    %s70 = sphi 0, %s69
    %s84 = sphi 0, %s70
    %s88 = sphi 0, %s88
    %s90 = sphi 0, %s88
    %s91 = sphi 0, %s90
    %s105 = sphi 0, %s91
    %s109 = sphi 0, %s109
    %s111 = sphi 0, %s109
    %s112 = sphi 0, %s111
    %s126 = sphi 0, %s112
    %s130 = sphi 0, %s130
    %s132 = sphi 0, %s130
    %s133 = sphi 0, %s132
    %s147 = sphi 0, %s133
    %s153 = sphi 0, %s155
    %s156 = sphi 0, %s153
    %s157 = sphi 0, %s156
    %s173 = sphi 0, %s157
  $region4: #{tpu_custom_call.1} parent=0 // loop_header_branch
    %15 = sbr.rel (%p13) target = $region8
  $region5: #{tpu_custom_call.1} parent=0 // loop_body
    %s17 = ssub.s32 %s12, 1
    %s18 = ssub.s32 %s12, 2
    %s19 = sadd.s32 %s12, 1
    %s20 = ssub.s32 %s12, %s19
    %p21 = scmp.eq.s32.totalorder %s20, 0
    %s23 = sadd.s32 %s22, 1
    %s24 = scalar_select %p21, %s22, %s23
    %p27 = pneg %p21
    %p28 = scmp.eq.s32.totalorder %s12, 1
    %p29 = por %p27, %p28
    %p30 = scmp.ne.s32.totalorder %s22, %s25
    %p31 = scmp.eq.s32.totalorder %s12, 0
    %p32 = por %p30, %p31
    %p33 = scmp.ne.s32.totalorder %s22, %s25
    %p34 = scmp.eq.s32.totalorder %s17, 1
    %p35 = por %p33, %p34
    %p36 = scmp.ne.s32.totalorder %s25, %s26
    %p37 = scmp.eq.s32.totalorder %s17, 0
    %p38 = por %p36, %p37
    %p39 = scmp.ne.s32.totalorder %s25, %s26
    %p40 = scmp.eq.s32.totalorder %s18, 1
    %p41 = por %p39, %p40
    %p43 = scmp.ne.s32.totalorder %s26, %s42
    %p44 = scmp.eq.s32.totalorder %s18, 0
    %p45 = por %p43, %p44
    %s47 = sadd.s32 %s46, 1
    %p50 = scmp.eq.s32.totalorder %s12, 1
    %p51 = scmp.ne.s32.totalorder %s46, %s48
    %p52 = scmp.eq.s32.totalorder %s12, 0
    %p53 = por %p51, %p52
    %p54 = scmp.ne.s32.totalorder %s46, %s48
    %p55 = scmp.eq.s32.totalorder %s17, 1
    %p56 = por %p54, %p55
    %p57 = scmp.ne.s32.totalorder %s48, %s49
    %p58 = scmp.eq.s32.totalorder %s17, 0
    %p59 = por %p57, %p58
    %p60 = scmp.ne.s32.totalorder %s48, %s49
    %p61 = scmp.eq.s32.totalorder %s18, 1
    %p62 = por %p60, %p61
    %p64 = scmp.ne.s32.totalorder %s49, %s63
    %p65 = scmp.eq.s32.totalorder %s18, 0
    %p66 = por %p64, %p65
    %s68 = sadd.s32 %s67, 1
    %p71 = scmp.eq.s32.totalorder %s12, 1
    %p72 = scmp.ne.s32.totalorder %s67, %s69
    %p73 = scmp.eq.s32.totalorder %s12, 0
    %p74 = por %p72, %p73
    %p75 = scmp.ne.s32.totalorder %s67, %s69
    %p76 = scmp.eq.s32.totalorder %s17, 1
    %p77 = por %p75, %p76
    %p78 = scmp.ne.s32.totalorder %s69, %s70
    %p79 = scmp.eq.s32.totalorder %s17, 0
    %p80 = por %p78, %p79
    %p81 = scmp.ne.s32.totalorder %s69, %s70
    %p82 = scmp.eq.s32.totalorder %s18, 1
    %p83 = por %p81, %p82
    %p85 = scmp.ne.s32.totalorder %s70, %s84
    %p86 = scmp.eq.s32.totalorder %s18, 0
    %p87 = por %p85, %p86
    %s89 = sadd.s32 %s88, 1
    %p92 = scmp.eq.s32.totalorder %s12, 1
    %p93 = scmp.ne.s32.totalorder %s88, %s90
    %p94 = scmp.eq.s32.totalorder %s12, 0
    %p95 = por %p93, %p94
    %p96 = scmp.ne.s32.totalorder %s88, %s90
    %p97 = scmp.eq.s32.totalorder %s17, 1
    %p98 = por %p96, %p97
    %p99 = scmp.ne.s32.totalorder %s90, %s91
    %p100 = scmp.eq.s32.totalorder %s17, 0
    %p101 = por %p99, %p100
    %p102 = scmp.ne.s32.totalorder %s90, %s91
    %p103 = scmp.eq.s32.totalorder %s18, 1
    %p104 = por %p102, %p103
    %p106 = scmp.ne.s32.totalorder %s91, %s105
    %p107 = scmp.eq.s32.totalorder %s18, 0
    %p108 = por %p106, %p107
    %s110 = sadd.s32 %s109, 1
    %p113 = scmp.eq.s32.totalorder %s12, 1
    %p114 = scmp.ne.s32.totalorder %s109, %s111
    %p115 = scmp.eq.s32.totalorder %s12, 0
    %p116 = por %p114, %p115
    %p117 = scmp.ne.s32.totalorder %s109, %s111
    %p118 = scmp.eq.s32.totalorder %s17, 1
    %p119 = por %p117, %p118
    %p120 = scmp.ne.s32.totalorder %s111, %s112
    %p121 = scmp.eq.s32.totalorder %s17, 0
    %p122 = por %p120, %p121
    %p123 = scmp.ne.s32.totalorder %s111, %s112
    %p124 = scmp.eq.s32.totalorder %s18, 1
    %p125 = por %p123, %p124
    %p127 = scmp.ne.s32.totalorder %s112, %s126
    %p128 = scmp.eq.s32.totalorder %s18, 0
    %p129 = por %p127, %p128
    %s131 = sadd.s32 %s130, 1
    %p134 = scmp.eq.s32.totalorder %s12, 1
    %p135 = scmp.ne.s32.totalorder %s130, %s132
    %p136 = scmp.eq.s32.totalorder %s12, 0
    %p137 = por %p135, %p136
    %p138 = scmp.ne.s32.totalorder %s130, %s132
    %p139 = scmp.eq.s32.totalorder %s17, 1
    %p140 = por %p138, %p139
    %p141 = scmp.ne.s32.totalorder %s132, %s133
    %p142 = scmp.eq.s32.totalorder %s17, 0
    %p143 = por %p141, %p142
    %p144 = scmp.ne.s32.totalorder %s132, %s133
    %p145 = scmp.eq.s32.totalorder %s18, 1
    %p146 = por %p144, %p145
    %p148 = scmp.ne.s32.totalorder %s133, %s147
    %p149 = scmp.eq.s32.totalorder %s18, 0
    %p150 = por %p148, %p149
    %s151 = ssub.s32 %s12, %s19
    %p152 = scmp.eq.s32.totalorder %s151, 0
    %s154 = sadd.s32 %s153, 1
    %s155 = scalar_select %p152, %s153, %s154
    %p158 = pneg %p152
    %p159 = scmp.eq.s32.totalorder %s12, 1
    %p160 = por %p158, %p159
    %p161 = scmp.ne.s32.totalorder %s153, %s156
    %p162 = scmp.eq.s32.totalorder %s12, 0
    %p163 = por %p161, %p162
    %p164 = scmp.ne.s32.totalorder %s153, %s156
    %p165 = scmp.eq.s32.totalorder %s17, 1
    %p166 = por %p164, %p165
    %p167 = scmp.ne.s32.totalorder %s156, %s157
    %p168 = scmp.eq.s32.totalorder %s17, 0
    %p169 = por %p167, %p168
    %p170 = scmp.ne.s32.totalorder %s156, %s157
    %p171 = scmp.eq.s32.totalorder %s18, 1
    %p172 = por %p170, %p171
    %p174 = scmp.ne.s32.totalorder %s157, %s173
    %p175 = scmp.eq.s32.totalorder %s18, 0
    %p176 = por %p174, %p175
    %p177 = scmp.le.s32.totalorder 1, %s12
    %p178 = scmp.lt.s32.totalorder %s12, 3
    %p179 = pnand %p177, %p178
    %p180 = pneg %p179
    // Predicated region
    $region9: #{tpu_custom_call.1} parent=5 // pred_check
      _
    $region10: #{tpu_custom_call.1} parent=5 // pred_check_branch
      %182 = sbr.rel (%p179) target = $region12
    $region11: #{tpu_custom_call.1} parent=5 // pred_region
      %s183 = ssub.s32 %s12, 1
      // Predicated region
      $region13: #{tpu_custom_call.1} parent=11 // pred_check
        %p184 = pneg %p59
      $region14: #{tpu_custom_call.1} parent=11 // pred_check_branch
        %186 = sbr.rel (%p184) target = $region16
      $region15: #{tpu_custom_call.1} parent=11 // pred_region
        _
      $region16: #{tpu_custom_call.1} parent=11 // pred_fallthru
        _
      // Predicated region
      $region17: #{tpu_custom_call.1} parent=11 // pred_check
        %p187 = pneg %p80
      $region18: #{tpu_custom_call.1} parent=11 // pred_check_branch
        %189 = sbr.rel (%p187) target = $region20
      $region19: #{tpu_custom_call.1} parent=11 // pred_region
        _
      $region20: #{tpu_custom_call.1} parent=11 // pred_fallthru
        _
      // Predicated region
      $region21: #{tpu_custom_call.1} parent=11 // pred_check
        %p190 = pneg %p101
      $region22: #{tpu_custom_call.1} parent=11 // pred_check_branch
        %192 = sbr.rel (%p190) target = $region24
      $region23: #{tpu_custom_call.1} parent=11 // pred_region
        _
      $region24: #{tpu_custom_call.1} parent=11 // pred_fallthru
        _
      // Predicated region
      $region25: #{tpu_custom_call.1} parent=11 // pred_check
        %p193 = pneg %p122
      $region26: #{tpu_custom_call.1} parent=11 // pred_check_branch
        %195 = sbr.rel (%p193) target = $region28
      $region27: #{tpu_custom_call.1} parent=11 // pred_region
        _
      $region28: #{tpu_custom_call.1} parent=11 // pred_fallthru
        _
      // Predicated region
      $region29: #{tpu_custom_call.1} parent=11 // pred_check
        %p196 = pneg %p143
      $region30: #{tpu_custom_call.1} parent=11 // pred_check_branch
        %198 = sbr.rel (%p196) target = $region32
      $region31: #{tpu_custom_call.1} parent=11 // pred_region
        _
      $region32: #{tpu_custom_call.1} parent=11 // pred_fallthru
        _
    $region12: #{tpu_custom_call.1} parent=5 // pred_fallthru
      _
    %p199 = scmp.lt.s32.totalorder %s12, 2
    // Predicated region
    $region33: #{tpu_custom_call.1} parent=5 // pred_check
      %p200 = pneg %p199
    $region34: #{tpu_custom_call.1} parent=5 // pred_check_branch
      %202 = sbr.rel (%p200) target = $region36
    $region35: #{tpu_custom_call.1} parent=5 // pred_region
      // Predicated region
      $region37: #{tpu_custom_call.1} parent=35 // pred_check
        %p203 = pneg %p32
      $region38: #{tpu_custom_call.1} parent=35 // pred_check_branch
        %205 = sbr.rel (%p203) target = $region40
      $region39: #{tpu_custom_call.1} parent=35 // pred_region
        %p206 = scmp.lt.s32.totalorder %s12, 1
        %s207 = scalar_select %p206, %s12, 1
        %s208 = smul.addr %s207, 2
        %s209 = smul.addr %s208, 8
        %s210 = scalar_lea.vmem %s0, %s209
      $region40: #{tpu_custom_call.1} parent=35 // pred_fallthru
        _
    $region36: #{tpu_custom_call.1} parent=5 // pred_fallthru
      _
    %p211 = scmp.le.s32.totalorder 1, %s12
    %p212 = scmp.lt.s32.totalorder %s12, 3
    %p213 = pnand %p211, %p212
    %p214 = pneg %p213
    // Predicated region
    $region41: #{tpu_custom_call.1} parent=5 // pred_check
      _
    $region42: #{tpu_custom_call.1} parent=5 // pred_check_branch
      %216 = sbr.rel (%p213) target = $region44
    $region43: #{tpu_custom_call.1} parent=5 // pred_region
      %s217 = ssub.s32 %s12, 1
      %p218 = scmp.lt.s32.totalorder %s17, 1
      %s219 = scalar_select %p218, %s17, 1
      %s220 = smul.addr %s219, 2
      %s221 = smul.addr %s220, 8
      %s222 = scalar_lea.vmem %s0, %s221
      %p223 = pneg %p38
      %p224 = pneg %p35
      %p225 = pneg %p59
      %p226 = pneg %p56
      %p227 = pneg %p80
      %p228 = pneg %p77
      %p229 = pneg %p101
      %p230 = pneg %p98
      %p231 = pneg %p122
      %p232 = pneg %p119
      %p233 = pneg %p143
      %p234 = pneg %p140
      %p235 = pneg %p169
      %p236 = pneg %p166
      %p237 = scmp.lt.s32.totalorder %s17, 1
      %s238 = scalar_select %p237, %s17, 1
      %s239 = smul.addr %s238, 2
      %s240 = smul.addr %s239, 8
      %s241 = scalar_lea.vmem %s6, %s240
      %p242 = scmp.lt.s32.totalorder %s17, 1
      %s243 = scalar_select %p242, %s17, 1
      %s244 = smul.addr %s243, 2
      %s245 = smul.addr %s244, 8
      %s246 = scalar_lea.vmem %s0, %s245
      %p247 = scmp.lt.s32.totalorder %s17, 1
      %s248 = scalar_select %p247, %s17, 1
      %s249 = smul.addr %s248, 2
      %s250 = smul.addr %s249, 8
      %s251 = scalar_lea.vmem %s6, %s250
      %v252 = vld [vmem:[%s246] sm:$0xff]
      %v253 = vld [vmem:[%s246 + $0x8] sm:$0xff]
      %v254 = vld [vmem:[%s1] sm:$0xff]
      %v255 = vld [vmem:[%s1 + $0x8] sm:$0xff]
      %v256 = vld [vmem:[%s2] sm:$0xf]
      %v257 = vld [vmem:[%s2 + $0x4] sm:$0xf]
      %v258 = vld [vmem:[%s3] sm:$0x3]
      %v259 = vld [vmem:[%s4] sm:$0xff]
      %v260 = vld [vmem:[%s4 + $0x8] sm:$0xff]
      %v261 = vld [vmem:[%s5] sm:$0x1]
      %vm262 = vcmask 31744
      %v264 = vsel %vm262, %v252, 0
      %v267 = vsel %vm262, %v253, 0
      %vm269 = vcmask 1043456
      %v271 = vsel %vm269, %v256, 0
      %273 = vmatpush.msra.mxu0 0.0
      %274 = vmatpush.msra.mxu0 0.0
      %275 = vmatpush.msra.mxu0 0.0
      %276 = vmatpush.msra.mxu0 0.0
      %277 = vmatpush.msra.mxu0 0.0
      %278 = vmatpush.msra.mxu0 0.0
      %279 = vmatpush.msra.mxu0 0.0
      %280 = vmatpush.msra.mxu0 0.0
      %281 = vmatpush.msra.mxu0 0.0
      %282 = vmatpush.msra.mxu0 0.0
      %283 = vmatpush.msra.mxu0 0.0
      %284 = vmatpush.msra.mxu0 0.0
      %285 = vmatpush.msra.mxu0 0.0
      %286 = vmatpush.msra.mxu0 0.0
      %287 = vmatpush.msra.mxu0 0.0
      %288 = vmatpush.msra.mxu0 %v271
      %289 = vmatmul.f32.gmra.mxu0 %v264
      %v290 = vpop.f32.mrf.mxu0
      %v291 = vadd.f32 0.0, %v290
      %292 = vmatmul.f32.gmra.mxu0 %v267
      %v293 = vpop.f32.mrf.mxu0
      %v294 = vadd.f32 0.0, %v293
      %295 = vdwg.mxu0
      %v297 = vsel %vm269, %v257, 0
      %299 = vmatpush.msra.mxu0 0.0
      %300 = vmatpush.msra.mxu0 0.0
      %301 = vmatpush.msra.mxu0 0.0
      %302 = vmatpush.msra.mxu0 0.0
      %303 = vmatpush.msra.mxu0 0.0
      %304 = vmatpush.msra.mxu0 0.0
      %305 = vmatpush.msra.mxu0 0.0
      %306 = vmatpush.msra.mxu0 0.0
      %307 = vmatpush.msra.mxu0 0.0
      %308 = vmatpush.msra.mxu0 0.0
      %309 = vmatpush.msra.mxu0 0.0
      %310 = vmatpush.msra.mxu0 0.0
      %311 = vmatpush.msra.mxu0 0.0
      %312 = vmatpush.msra.mxu0 0.0
      %313 = vmatpush.msra.mxu0 0.0
      %314 = vmatpush.msra.mxu0 %v297
      %315 = vmatmul.f32.gmra.mxu0 %v264
      %v316 = vpop.f32.mrf.mxu0
      %v317 = vadd.f32 0.0, %v316
      %318 = vmatmul.f32.gmra.mxu0 %v267
      %v319 = vpop.f32.mrf.mxu0
      %v320 = vadd.f32 0.0, %v319
      %321 = vdwg.mxu0
      %vm322 = vcmask 64512
      %v324 = vsel %vm322, %v291, 0
      %v327 = vsel %vm322, %v294, 0
      %329 = vmatpush.xpose.msra.mxu0 0.0
      %330 = vmatpush.xpose.msra.mxu0 0.0
      %331 = vmatpush.xpose.msra.mxu0 0.0
      %332 = vmatpush.xpose.msra.mxu0 0.0
      %333 = vmatpush.xpose.msra.mxu0 0.0
      %334 = vmatpush.xpose.msra.mxu0 0.0
      %335 = vmatpush.xpose.msra.mxu0 0.0
      %336 = vmatpush.xpose.msra.mxu0 0.0
      %337 = vmatpush.xpose.msra.mxu0 0.0
      %338 = vmatpush.xpose.msra.mxu0 0.0
      %339 = vmatpush.xpose.msra.mxu0 0.0
      %340 = vmatpush.xpose.msra.mxu0 0.0
      %341 = vmatpush.xpose.msra.mxu0 0.0
      %342 = vmatpush.xpose.msra.mxu0 0.0
      %343 = vmatpush.xpose.msra.mxu0 %v327
      %344 = vmatpush.xpose.msra.mxu0 %v324
      %345 = vmatmul.f32.gmra.mxu0 %v324
      %v346 = vpop.f32.mrf.mxu0
      %v347 = vadd.f32 0.0, %v346
      %348 = vmatmul.f32.gmra.mxu0 %v327
      %v349 = vpop.f32.mrf.mxu0
      %v350 = vadd.f32 0.0, %v349
      %351 = vdwg.mxu0
      %v353 = vsel %vm322, %v317, 0
      %v356 = vsel %vm322, %v320, 0
      %358 = vmatpush.xpose.msra.mxu0 0.0
      %359 = vmatpush.xpose.msra.mxu0 0.0
      %360 = vmatpush.xpose.msra.mxu0 0.0
      %361 = vmatpush.xpose.msra.mxu0 0.0
      %362 = vmatpush.xpose.msra.mxu0 0.0
      %363 = vmatpush.xpose.msra.mxu0 0.0
      %364 = vmatpush.xpose.msra.mxu0 0.0
      %365 = vmatpush.xpose.msra.mxu0 0.0
      %366 = vmatpush.xpose.msra.mxu0 0.0
      %367 = vmatpush.xpose.msra.mxu0 0.0
      %368 = vmatpush.xpose.msra.mxu0 0.0
      %369 = vmatpush.xpose.msra.mxu0 0.0
      %370 = vmatpush.xpose.msra.mxu0 0.0
      %371 = vmatpush.xpose.msra.mxu0 0.0
      %372 = vmatpush.xpose.msra.mxu0 %v356
      %373 = vmatpush.xpose.msra.mxu0 %v353
      %374 = vmatmul.f32.gmra.mxu0 %v353
      %v375 = vpop.f32.mrf.mxu0
      %v376 = vadd.f32 0.0, %v375
      %377 = vmatmul.f32.gmra.mxu0 %v356
      %v378 = vpop.f32.mrf.mxu0
      %v379 = vadd.f32 0.0, %v378
      %380 = vdwg.mxu0
      %v381 = vmul.f32 %v347, %v254
      %v382 = vmul.f32 %v350, %v255
      %v383 = vmul.f32 %v376, %v254
      %v384 = vmul.f32 %v379, %v255
      %vm385 = vcmp.eq.f32.partialorder %v381, 0.0
      %vm386 = vcmp.eq.f32.partialorder %v382, 0.0
      %vm387 = vcmp.eq.f32.partialorder %v383, 0.0
      %vm388 = vcmp.eq.f32.partialorder %v384, 0.0
      %v389 = vsel %vm385, -1e+16, %v381
      %v390 = vsel %vm386, -1e+16, %v382
      %v391 = vsel %vm387, -1e+16, %v383
      %v392 = vsel %vm388, -1e+16, %v384
      %vm393 = vcmask 130048
      %v394 = vsel %vm393, %v389, -inf
      %395 = vmax.xlane.f32.xlu0 %v394
      %v396 = vpop.xlane.xlu0 %395
      %v397 = vsel %vm393, %v390, -inf
      %398 = vmax.xlane.f32.xlu0 %v397
      %v399 = vpop.xlane.xlu0 %398
      %v400 = vsel %vm393, %v391, -inf
      %401 = vmax.xlane.f32.xlu0 %v400
      %v402 = vpop.xlane.xlu0 %401
      %v403 = vsel %vm393, %v392, -inf
      %404 = vmax.xlane.f32.xlu0 %v403
      %v405 = vpop.xlane.xlu0 %404
      %v406 = vsub.f32 %v389, %v396
      %v407 = vsub.f32 %v390, %v399
      %v408 = vsub.f32 %v391, %v402
      %v409 = vsub.f32 %v392, %v405
      %v410 = vmul.f32 %v406, 1.442695
      %v411 = vpow.pop %v410
      %v412 = vmul.f32 %v407, 1.442695
      %v413 = vpow.pop %v412
      %v414 = vmul.f32 %v408, 1.442695
      %v415 = vpow.pop %v414
      %v416 = vmul.f32 %v409, 1.442695
      %v417 = vpow.pop %v416
      %v418 = vsel %vm393, %v411, 0.0
      %419 = vadd.xlane.f32.xlu0 %v418
      %v420 = vpop.xlane.xlu0 %419
      %v421 = vsel %vm393, %v413, 0.0
      %422 = vadd.xlane.f32.xlu0 %v421
      %v423 = vpop.xlane.xlu0 %422
      %v424 = vsel %vm393, %v415, 0.0
      %425 = vadd.xlane.f32.xlu0 %v424
      %v426 = vpop.xlane.xlu0 %425
      %v427 = vsel %vm393, %v417, 0.0
      %428 = vadd.xlane.f32.xlu0 %v427
      %v429 = vpop.xlane.xlu0 %428
      %v430 = vrcp.pop %v420
      %v431 = vrcp.pop %v423
      %v432 = vrcp.pop %v426
      %v433 = vrcp.pop %v429
      %v434 = vmul.f32 %v411, %v430
      %v435 = vmul.f32 %v413, %v431
      %v436 = vmul.f32 %v415, %v432
      %v437 = vmul.f32 %v417, %v433
      %v439 = vsel %vm393, %v434, 0
      %v442 = vsel %vm393, %v435, 0
      %444 = vmatpush.msra.mxu0 0.0
      %445 = vmatpush.msra.mxu0 0.0
      %446 = vmatpush.msra.mxu0 0.0
      %447 = vmatpush.msra.mxu0 0.0
      %448 = vmatpush.msra.mxu0 0.0
      %449 = vmatpush.msra.mxu0 0.0
      %450 = vmatpush.msra.mxu0 0.0
      %451 = vmatpush.msra.mxu0 0.0
      %452 = vmatpush.msra.mxu0 0.0
      %453 = vmatpush.msra.mxu0 0.0
      %454 = vmatpush.msra.mxu0 0.0
      %455 = vmatpush.msra.mxu0 0.0
      %456 = vmatpush.msra.mxu0 0.0
      %457 = vmatpush.msra.mxu0 0.0
      %458 = vmatpush.msra.mxu0 %v294
      %459 = vmatpush.msra.mxu0 %v291
      %460 = vmatmul.f32.gmra.mxu0 %v439
      %v461 = vpop.f32.mrf.mxu0
      %v462 = vadd.f32 0.0, %v461
      %463 = vmatmul.f32.gmra.mxu0 %v442
      %v464 = vpop.f32.mrf.mxu0
      %v465 = vadd.f32 0.0, %v464
      %466 = vdwg.mxu0
      %v468 = vsel %vm393, %v436, 0
      %v471 = vsel %vm393, %v437, 0
      %473 = vmatpush.msra.mxu0 0.0
      %474 = vmatpush.msra.mxu0 0.0
      %475 = vmatpush.msra.mxu0 0.0
      %476 = vmatpush.msra.mxu0 0.0
      %477 = vmatpush.msra.mxu0 0.0
      %478 = vmatpush.msra.mxu0 0.0
      %479 = vmatpush.msra.mxu0 0.0
      %480 = vmatpush.msra.mxu0 0.0
      %481 = vmatpush.msra.mxu0 0.0
      %482 = vmatpush.msra.mxu0 0.0
      %483 = vmatpush.msra.mxu0 0.0
      %484 = vmatpush.msra.mxu0 0.0
      %485 = vmatpush.msra.mxu0 0.0
      %486 = vmatpush.msra.mxu0 0.0
      %487 = vmatpush.msra.mxu0 %v320
      %488 = vmatpush.msra.mxu0 %v317
      %489 = vmatmul.f32.gmra.mxu0 %v468
      %v490 = vpop.f32.mrf.mxu0
      %v491 = vadd.f32 0.0, %v490
      %492 = vmatmul.f32.gmra.mxu0 %v471
      %v493 = vpop.f32.mrf.mxu0
      %v494 = vadd.f32 0.0, %v493
      %495 = vdwg.mxu0
      %v497 = vrot.slane %v258, 1
      %v498 = vperm.slane %v258, 0
      %v499 = vperm.slane %v497, 0
      %v502 = vadd.f32 %v462, %v498
      %v503 = vadd.f32 %v465, %v498
      %v504 = vadd.f32 %v491, %v499
      %v505 = vadd.f32 %v494, %v499
      %vm506 = vcmp.ge.f32.partialorder %v502, 0.0
      %vm507 = vcmp.ge.f32.partialorder %v503, 0.0
      %vm508 = vcmp.ge.f32.partialorder %v504, 0.0
      %vm509 = vcmp.ge.f32.partialorder %v505, 0.0
      %v510 = vmul.f32 %v502, 0.01
      %v511 = vmul.f32 %v503, 0.01
      %v512 = vmul.f32 %v504, 0.01
      %v513 = vmul.f32 %v505, 0.01
      %v514 = vsel %vm506, %v502, %v510
      %v515 = vsel %vm507, %v503, %v511
      %v516 = vsel %vm508, %v504, %v512
      %v517 = vsel %vm509, %v505, %v513
      %v519 = vsel %vm322, %v516, 0
      %v522 = vsel %vm322, %v517, 0
      %524 = vmatpush.msra.mxu0 0.0
      %525 = vmatpush.msra.mxu0 0.0
      %526 = vmatpush.msra.mxu0 0.0
      %527 = vmatpush.msra.mxu0 0.0
      %528 = vmatpush.msra.mxu0 0.0
      %529 = vmatpush.msra.mxu0 0.0
      %530 = vmatpush.msra.mxu0 0.0
      %531 = vmatpush.msra.mxu0 0.0
      %532 = vmatpush.msra.mxu0 0.0
      %533 = vmatpush.msra.mxu0 0.0
      %534 = vmatpush.msra.mxu0 0.0
      %535 = vmatpush.msra.mxu0 0.0
      %536 = vmatpush.msra.mxu0 0.0
      %537 = vmatpush.msra.mxu0 0.0
      %538 = vmatpush.msra.mxu0 0.0
      %539 = vmatpush.msra.mxu0 %v260
      %540 = vmatmul.f32.gmra.mxu0 %v519
      %v541 = vpop.f32.mrf.mxu0
      %v542 = vadd.f32 0.0, %v541
      %543 = vmatmul.f32.gmra.mxu0 %v522
      %v544 = vpop.f32.mrf.mxu0
      %v545 = vadd.f32 0.0, %v544
      %546 = vdwg.mxu0
      %v548 = vsel %vm322, %v514, 0
      %v551 = vsel %vm322, %v515, 0
      %553 = vmatpush.msra.mxu0 0.0
      %554 = vmatpush.msra.mxu0 0.0
      %555 = vmatpush.msra.mxu0 0.0
      %556 = vmatpush.msra.mxu0 0.0
      %557 = vmatpush.msra.mxu0 0.0
      %558 = vmatpush.msra.mxu0 0.0
      %559 = vmatpush.msra.mxu0 0.0
      %560 = vmatpush.msra.mxu0 0.0
      %561 = vmatpush.msra.mxu0 0.0
      %562 = vmatpush.msra.mxu0 0.0
      %563 = vmatpush.msra.mxu0 0.0
      %564 = vmatpush.msra.mxu0 0.0
      %565 = vmatpush.msra.mxu0 0.0
      %566 = vmatpush.msra.mxu0 0.0
      %567 = vmatpush.msra.mxu0 0.0
      %568 = vmatpush.msra.mxu0 %v259
      %569 = vmatmul.f32.gmra.mxu0 %v548
      %v570 = vpop.f32.mrf.mxu0
      %v571 = vadd.f32 %v542, %v570
      %572 = vmatmul.f32.gmra.mxu0 %v551
      %v573 = vpop.f32.mrf.mxu0
      %v574 = vadd.f32 %v545, %v573
      %575 = vdwg.mxu0
      %vm576 = vcmask 15360
      %v578 = vsel %vm576, %v571, 0
      %v581 = vsel %vm576, %v574, 0
      %583 = vmatpush.xpose.msra.mxu0 0.0
      %584 = vmatpush.xpose.msra.mxu0 0.0
      %585 = vmatpush.xpose.msra.mxu0 0.0
      %586 = vmatpush.xpose.msra.mxu0 0.0
      %587 = vmatpush.xpose.msra.mxu0 0.0
      %588 = vmatpush.xpose.msra.mxu0 0.0
      %589 = vmatpush.xpose.msra.mxu0 0.0
      %590 = vmatpush.xpose.msra.mxu0 0.0
      %591 = vmatpush.xpose.msra.mxu0 0.0
      %592 = vmatpush.xpose.msra.mxu0 0.0
      %593 = vmatpush.xpose.msra.mxu0 0.0
      %594 = vmatpush.xpose.msra.mxu0 0.0
      %595 = vmatpush.xpose.msra.mxu0 0.0
      %596 = vmatpush.xpose.msra.mxu0 0.0
      %597 = vmatpush.xpose.msra.mxu0 %v581
      %598 = vmatpush.xpose.msra.mxu0 %v578
      %599 = vmatmul.f32.gmra.mxu0 %v578
      %v600 = vpop.f32.mrf.mxu0
      %v601 = vadd.f32 0.0, %v600
      %602 = vmatmul.f32.gmra.mxu0 %v581
      %v603 = vpop.f32.mrf.mxu0
      %v604 = vadd.f32 0.0, %v603
      %605 = vdwg.mxu0
      %v606 = vmul.f32 %v601, %v254
      %v607 = vmul.f32 %v604, %v255
      %vm608 = vcmp.eq.f32.partialorder %v606, 0.0
      %vm609 = vcmp.eq.f32.partialorder %v607, 0.0
      %v610 = vsel %vm608, -1e+16, %v606
      %v611 = vsel %vm609, -1e+16, %v607
      %v612 = vsel %vm393, %v610, -inf
      %613 = vmax.xlane.f32.xlu0 %v612
      %v614 = vpop.xlane.xlu0 %613
      %v615 = vsel %vm393, %v611, -inf
      %616 = vmax.xlane.f32.xlu0 %v615
      %v617 = vpop.xlane.xlu0 %616
      %v618 = vsub.f32 %v610, %v614
      %v619 = vsub.f32 %v611, %v617
      %v620 = vmul.f32 %v618, 1.442695
      %v621 = vpow.pop %v620
      %v622 = vmul.f32 %v619, 1.442695
      %v623 = vpow.pop %v622
      %v624 = vsel %vm393, %v621, 0.0
      %625 = vadd.xlane.f32.xlu0 %v624
      %v626 = vpop.xlane.xlu0 %625
      %v627 = vsel %vm393, %v623, 0.0
      %628 = vadd.xlane.f32.xlu0 %v627
      %v629 = vpop.xlane.xlu0 %628
      %v630 = vrcp.pop %v626
      %v631 = vrcp.pop %v629
      %v632 = vmul.f32 %v621, %v630
      %v633 = vmul.f32 %v623, %v631
      %v635 = vperm.slane %v261, 0
      %v638 = vsel %vm393, %v632, 0
      %v641 = vsel %vm393, %v633, 0
      %643 = vmatpush.msra.mxu0 0.0
      %644 = vmatpush.msra.mxu0 0.0
      %645 = vmatpush.msra.mxu0 0.0
      %646 = vmatpush.msra.mxu0 0.0
      %647 = vmatpush.msra.mxu0 0.0
      %648 = vmatpush.msra.mxu0 0.0
      %649 = vmatpush.msra.mxu0 0.0
      %650 = vmatpush.msra.mxu0 0.0
      %651 = vmatpush.msra.mxu0 0.0
      %652 = vmatpush.msra.mxu0 0.0
      %653 = vmatpush.msra.mxu0 0.0
      %654 = vmatpush.msra.mxu0 0.0
      %655 = vmatpush.msra.mxu0 0.0
      %656 = vmatpush.msra.mxu0 0.0
      %657 = vmatpush.msra.mxu0 %v574
      %658 = vmatpush.msra.mxu0 %v571
      %659 = vmatmul.f32.gmra.mxu0 %v638
      %v660 = vpop.f32.mrf.mxu0
      %v661 = vadd.f32 %v635, %v660
      %662 = vmatmul.f32.gmra.mxu0 %v641
      %v663 = vpop.f32.mrf.mxu0
      %v664 = vadd.f32 %v635, %v663
      %665 = vdwg.mxu0
      %vm666 = vcmp.ge.f32.partialorder %v661, 0.0
      %vm667 = vcmp.ge.f32.partialorder %v664, 0.0
      %v668 = vmul.f32 %v661, 0.01
      %v669 = vmul.f32 %v664, 0.01
      %v670 = vsel %vm666, %v661, %v668
      %v671 = vsel %vm667, %v664, %v669
      %672 = vst.msk [vmem:[%s251] sm:$0xff] %vm576, %v670
      %673 = vst.msk [vmem:[%s251 + $0x8] sm:$0xff] %vm576, %v671
      %p674 = scmp.lt.s32.totalorder %s17, 1
      %s675 = scalar_select %p674, %s17, 1
      %s676 = smul.addr %s675, 2
      %s677 = smul.addr %s676, 8
      %s678 = scalar_lea.vmem %s6, %s677
      // Predicated region
      $region45: #{tpu_custom_call.1} parent=43 // pred_check
        %p679 = pneg %p166
      $region46: #{tpu_custom_call.1} parent=43 // pred_check_branch
        %681 = sbr.rel (%p679) target = $region48
      $region47: #{tpu_custom_call.1} parent=43 // pred_region
        _
      $region48: #{tpu_custom_call.1} parent=43 // pred_fallthru
        _
    $region44: #{tpu_custom_call.1} parent=5 // pred_fallthru
      _
    %p682 = scmp.le.s32.totalorder 2, %s12
    // Predicated region
    $region49: #{tpu_custom_call.1} parent=5 // pred_check
      %p683 = pneg %p682
    $region50: #{tpu_custom_call.1} parent=5 // pred_check_branch
      %685 = sbr.rel (%p683) target = $region52
    $region51: #{tpu_custom_call.1} parent=5 // pred_region
      %s686 = ssub.s32 %s12, 2
      // Predicated region
      $region53: #{tpu_custom_call.1} parent=51 // pred_check
        %p687 = pneg %p172
      $region54: #{tpu_custom_call.1} parent=51 // pred_check_branch
        %689 = sbr.rel (%p687) target = $region56
      $region55: #{tpu_custom_call.1} parent=51 // pred_region
        %p690 = scmp.lt.s32.totalorder %s18, 1
        %s691 = scalar_select %p690, %s18, 1
        %s692 = smul.addr %s691, 2
        %s693 = smul.addr %s692, 8
        %s694 = scalar_lea.vmem %s6, %s693
      $region56: #{tpu_custom_call.1} parent=51 // pred_fallthru
        _
    $region52: #{tpu_custom_call.1} parent=5 // pred_fallthru
      _
  $region6: #{tpu_custom_call.1} parent=0 // loop_footer
    %s16 = sadd.s32 1, %s12
  $region7: #{tpu_custom_call.1} parent=0 // loop_footer_branch
    %11 = sbr.rel target = $region3
  $region8: #{tpu_custom_call.1} parent=0 // loop_exit
    _

</llo_original>
